<compile_context>
chip_gen: v7x
topology: tpu7x:2x2x1
jax: 0.10.0
libtpu: 0.0.40
codegen_flags: <defaults>
</compile_context>

<pallas_src>
import jax
import jax.numpy as jnp
from jax.experimental import pallas as pl
from jax.experimental.pallas import tpu as pltpu

LANE = 128          # lane width: pad feature dims to a multiple of this
SUBLANE = 8         # sublane granularity for the batch tile


def _round_up(n: int, m: int) -> int:
    return (n + m - 1) // m * m


# ----------------------------------------------------------------------------
# Kernel
# ----------------------------------------------------------------------------
def kan_kernel(theta_ref, kappa_ref,            # SMEM scalars
               x_ref,                           # (TILE_M, K_PAD)  bf16
               w1_ref, b1_ref,                  # (K_PAD, N_PAD) bf16, (1, N_PAD) f32
               w2_ref, b2_ref,                  # (N_PAD, N_PAD) bf16, (1, N_PAD) f32
               w3_ref, b3_ref,                  # (N_PAD, N_PAD) bf16, (1, N_PAD) f32
               out_ref):                        # (TILE_M, N_PAD)  f32
    # Scalars: read once (scalar slot), reused in the vector math below.
    theta = theta_ref[0]
    kappa = kappa_ref[0]

    # ---- linear_out = self.linear(x): bf16 operands, f32 accumulate on MXU ----
    lin = (jnp.dot(x_ref[...], w1_ref[...], preferred_element_type=jnp.float32)
           + b1_ref[...])

    # ---- NKAT activation (all f32 element-wise: VPU + one sin/cos on EUP) ----
    lin2 = lin * lin                       # reused, computed once
    sin_l = jnp.sin(lin)                   # EUP
    cos_l = jnp.cos(lin)                   # EUP (sin(z+pi/2) saves nothing)
    act = (jnp.maximum(lin, 0.0)
           + (theta * lin) * sin_l
           + (kappa * lin2) * cos_l)

    # ---- nonlinear = Linear -> Tanh -> Linear ----
    h = (jnp.dot(act.astype(jnp.bfloat16), w2_ref[...],
                 preferred_element_type=jnp.float32) + b2_ref[...])
    h = jnp.tanh(h)                        # EUP
    out = (jnp.dot(h.astype(jnp.bfloat16), w3_ref[...],
                   preferred_element_type=jnp.float32) + b3_ref[...])

    # Lane-dense store: last dim = N_PAD = 128 -> unmasked vst.
    out_ref[...] = out.astype(out_ref.dtype)


# ----------------------------------------------------------------------------
# Host-side wrappers
# ----------------------------------------------------------------------------
def init_params(key, input_dim, output_dim, theta, kappa):
    """Logical (unpadded) parameters; weights stored [in, out]."""
    ks = jax.random.split(key, 6)
    w1 = jax.random.normal(ks[0], (input_dim, output_dim), jnp.float32) * 0.1
    b1 = jax.random.normal(ks[1], (1, output_dim), jnp.float32) * 0.01
    w2 = jax.random.normal(ks[2], (output_dim, output_dim), jnp.float32) * 0.1
    b2 = jax.random.normal(ks[3], (1, output_dim), jnp.float32) * 0.01
    w3 = jax.random.normal(ks[4], (output_dim, output_dim), jnp.float32) * 0.1
    b3 = jax.random.normal(ks[5], (1, output_dim), jnp.float32) * 0.01
    return {
        "theta": jnp.array([theta], jnp.float32),
        "kappa": jnp.array([kappa], jnp.float32),
        "w1": w1, "b1": b1, "w2": w2, "b2": b2, "w3": w3, "b3": b3,
    }


def pad_params(params, input_dim, output_dim):
    """Zero-pad feature dims to 128 lanes; weights to bf16 (biases stay f32)."""
    k_pad = _round_up(input_dim, LANE)
    n_pad = _round_up(output_dim, LANE)

    def pad2(a, r, c):
        return jnp.pad(a, ((0, r - a.shape[0]), (0, c - a.shape[1])))

    padded = {
        "theta": params["theta"],
        "kappa": params["kappa"],
        "w1": pad2(params["w1"], k_pad, n_pad).astype(jnp.bfloat16),
        "b1": pad2(params["b1"], 1, n_pad),
        "w2": pad2(params["w2"], n_pad, n_pad).astype(jnp.bfloat16),
        "b2": pad2(params["b2"], 1, n_pad),
        "w3": pad2(params["w3"], n_pad, n_pad).astype(jnp.bfloat16),
        "b3": pad2(params["b3"], 1, n_pad),
    }
    return padded, k_pad, n_pad


def simplified_kan_layer(x, padded, input_dim, output_dim, k_pad, n_pad,
                         tile_m=256):
    """x: [batch, input_dim] f32 -> [batch, output_dim] f32.

    tile_m: batch tile height. 256 fills the v6e/v7x MXU; use 128 on v5e.
    It is clamped down for small batches (still sublane-aligned).
    """
    batch = x.shape[0]
    tm = min(tile_m, _round_up(batch, SUBLANE))
    batch_pad = _round_up(batch, tm)
    grid = (batch_pad // tm,)

    # Zero-pad the batch (to a tile multiple) and the contraction dim, cast to
    # bf16 for the MXU.  Padded rows/cols are zero so results are exact.
    x_pad = jnp.pad(x, ((0, batch_pad - batch),
                        (0, k_pad - input_dim))).astype(jnp.bfloat16)

    smem = pl.BlockSpec(memory_space=pltpu.MemorySpace.SMEM)

    def resident(shape):               # weights / biases: same block every step
        return pl.BlockSpec(shape, lambda i: (0, 0))

    cost = pl.CostEstimate(
        flops=2 * batch_pad * (k_pad * n_pad + 2 * n_pad * n_pad),
        transcendentals=3 * batch_pad * n_pad,          # sin + cos + tanh
        bytes_accessed=(batch_pad * k_pad * 2                     # x (bf16)
                        + (k_pad * n_pad + 2 * n_pad * n_pad) * 2  # weights
                        + 3 * n_pad * 4                            # biases
                        + batch_pad * n_pad * 4                    # out
                        + 8))                                      # theta/kappa

    out_pad = pl.pallas_call(
        kan_kernel,
        out_shape=jax.ShapeDtypeStruct((batch_pad, n_pad), jnp.float32),
        grid=grid,
        in_specs=[smem, smem,                                   # theta, kappa
                  pl.BlockSpec((tm, k_pad), lambda i: (i, 0)),  # x tile
                  resident((k_pad, n_pad)), resident((1, n_pad)),   # w1, b1
                  resident((n_pad, n_pad)), resident((1, n_pad)),   # w2, b2
                  resident((n_pad, n_pad)), resident((1, n_pad))],  # w3, b3
        out_specs=pl.BlockSpec((tm, n_pad), lambda i: (i, 0)),
        compiler_params=pltpu.CompilerParams(
            dimension_semantics=("parallel",)),
        cost_estimate=cost,
    )(padded["theta"], padded["kappa"],
      x_pad, padded["w1"], padded["b1"],
      padded["w2"], padded["b2"],
      padded["w3"], padded["b3"])

    # Slice the logical result back out (cheap XLA slice outside the kernel,
    # keeps the in-kernel store lane-dense).
    return out_pad[:batch, :output_dim]


def reference_forward(x, p):
    """Pure-JAX f32 reference mirroring the PyTorch forward."""
    lin = x @ p["w1"] + p["b1"]
    act = (jnp.maximum(lin, 0.0)
           + p["theta"][0] * lin * jnp.sin(lin)
           + p["kappa"][0] * lin * lin * jnp.cos(lin))
    h = jnp.tanh(act @ p["w2"] + p["b2"])
    return h @ p["w3"] + p["b3"]


if __name__ == "__main__":
    batch, input_dim, output_dim = 8, 16, 32
    theta, kappa = 0.1, 0.05

    key = jax.random.PRNGKey(0)
    k_x, k_p = jax.random.split(key)
    x = jax.random.normal(k_x, (batch, input_dim), jnp.float32)
    params = init_params(k_p, input_dim, output_dim, theta, kappa)
    padded, k_pad, n_pad = pad_params(params, input_dim, output_dim)

    out = simplified_kan_layer(x, padded, input_dim, output_dim, k_pad, n_pad)
    out = jax.block_until_ready(out)

    ref = reference_forward(x, params)
    assert out.shape == (batch, output_dim)
    # bf16 matmul operands (f32 accumulation) -> loosened tolerance vs f32 ref.
    assert jnp.allclose(out, ref, atol=5e-2, rtol=5e-2), "mismatch vs reference"

    print("KERNEL_OK")
</pallas_src>

<mosaic_0001>
module attributes {stable_mosaic.version = 11 : i64} {
  func.func @kan_kernel(%arg0: i32, %arg1: memref<1xf32, #tpu.memory_space<smem>>, %arg2: memref<1xf32, #tpu.memory_space<smem>>, %arg3: memref<8x128xbf16, #tpu.memory_space<vmem>>, %arg4: memref<128x128xbf16, #tpu.memory_space<vmem>>, %arg5: memref<1x128xf32, #tpu.memory_space<vmem>>, %arg6: memref<128x128xbf16, #tpu.memory_space<vmem>>, %arg7: memref<1x128xf32, #tpu.memory_space<vmem>>, %arg8: memref<128x128xbf16, #tpu.memory_space<vmem>>, %arg9: memref<1x128xf32, #tpu.memory_space<vmem>>, %arg10: memref<8x128xf32, #tpu.memory_space<vmem>>) attributes {dimension_semantics = [#tpu.dimension_semantics<parallel>], iteration_bounds = array<i64: 1>, scalar_prefetch = 0 : i64, scratch_operands = 0 : i64, tpu.core_type = #tpu.core_type<tc>, window_params = [{transform_indices = @transform_0, window_bounds = array<i64: 1>}, {transform_indices = @transform_1, window_bounds = array<i64: 1>}, {transform_indices = @transform_2, window_bounds = array<i64: 8, 128>}, {pipeline_mode = #tpu.pipeline_mode<synchronous>, transform_indices = @transform_3, window_bounds = array<i64: 128, 128>}, {pipeline_mode = #tpu.pipeline_mode<synchronous>, transform_indices = @transform_4, window_bounds = array<i64: 1, 128>}, {pipeline_mode = #tpu.pipeline_mode<synchronous>, transform_indices = @transform_5, window_bounds = array<i64: 128, 128>}, {pipeline_mode = #tpu.pipeline_mode<synchronous>, transform_indices = @transform_6, window_bounds = array<i64: 1, 128>}, {pipeline_mode = #tpu.pipeline_mode<synchronous>, transform_indices = @transform_7, window_bounds = array<i64: 128, 128>}, {pipeline_mode = #tpu.pipeline_mode<synchronous>, transform_indices = @transform_8, window_bounds = array<i64: 1, 128>}, {transform_indices = @transform_9, window_bounds = array<i64: 8, 128>}]} {
    %c0 = arith.constant 0 : index
    %0 = memref.load %arg1[%c0] : memref<1xf32, #tpu.memory_space<smem>>
    %c0_0 = arith.constant 0 : index
    %1 = memref.load %arg2[%c0_0] : memref<1xf32, #tpu.memory_space<smem>>
    %c0_1 = arith.constant 0 : index
    %c0_2 = arith.constant 0 : index
    %2 = vector.load %arg3[%c0_1, %c0_2] : memref<8x128xbf16, #tpu.memory_space<vmem>>, vector<8x128xbf16>
    %c0_3 = arith.constant 0 : index
    %c0_4 = arith.constant 0 : index
    %3 = vector.load %arg4[%c0_3, %c0_4] : memref<128x128xbf16, #tpu.memory_space<vmem>>, vector<128x128xbf16>
    %cst = arith.constant dense<0.000000e+00> : vector<8x128xf32>
    %4 = tpu.matmul %2, %3, %cst {dimension_numbers = #tpu.dot_dimension_numbers<[1], [0], [0], [1], [0, 0, 1, 1], [], []>} : vector<8x128xbf16>, vector<128x128xbf16>, vector<8x128xf32> -> vector<8x128xf32>
    %c0_5 = arith.constant 0 : index
    %c0_6 = arith.constant 0 : index
    %5 = vector.load %arg5[%c0_5, %c0_6] : memref<1x128xf32, #tpu.memory_space<vmem>>, vector<1x128xf32>
    %6 = vector.broadcast %5 : vector<1x128xf32> to vector<8x128xf32>
    %7 = arith.addf %4, %6 : vector<8x128xf32>
    %8 = arith.mulf %7, %7 : vector<8x128xf32>
    %9 = math.sin %7 : vector<8x128xf32>
    %10 = math.cos %7 : vector<8x128xf32>
    %cst_7 = arith.constant 0.000000e+00 : f32
    %11 = vector.broadcast %cst_7 : f32 to vector<8x128xf32>
    %12 = arith.maximumf %7, %11 : vector<8x128xf32>
    %13 = vector.broadcast %0 : f32 to vector<8x128xf32>
    %14 = arith.mulf %13, %7 : vector<8x128xf32>
    %15 = arith.mulf %14, %9 : vector<8x128xf32>
    %16 = arith.addf %12, %15 : vector<8x128xf32>
    %17 = vector.broadcast %1 : f32 to vector<8x128xf32>
    %18 = arith.mulf %17, %8 : vector<8x128xf32>
    %19 = arith.mulf %18, %10 : vector<8x128xf32>
    %20 = arith.addf %16, %19 : vector<8x128xf32>
    %21 = arith.truncf %20 : vector<8x128xf32> to vector<8x128xbf16>
    %c0_8 = arith.constant 0 : index
    %c0_9 = arith.constant 0 : index
    %22 = vector.load %arg6[%c0_8, %c0_9] : memref<128x128xbf16, #tpu.memory_space<vmem>>, vector<128x128xbf16>
    %cst_10 = arith.constant dense<0.000000e+00> : vector<8x128xf32>
    %23 = tpu.matmul %21, %22, %cst_10 {dimension_numbers = #tpu.dot_dimension_numbers<[1], [0], [0], [1], [0, 0, 1, 1], [], []>} : vector<8x128xbf16>, vector<128x128xbf16>, vector<8x128xf32> -> vector<8x128xf32>
    %c0_11 = arith.constant 0 : index
    %c0_12 = arith.constant 0 : index
    %24 = vector.load %arg7[%c0_11, %c0_12] : memref<1x128xf32, #tpu.memory_space<vmem>>, vector<1x128xf32>
    %25 = vector.broadcast %24 : vector<1x128xf32> to vector<8x128xf32>
    %26 = arith.addf %23, %25 : vector<8x128xf32>
    %27 = math.tanh %26 : vector<8x128xf32>
    %28 = arith.truncf %27 : vector<8x128xf32> to vector<8x128xbf16>
    %c0_13 = arith.constant 0 : index
    %c0_14 = arith.constant 0 : index
    %29 = vector.load %arg8[%c0_13, %c0_14] : memref<128x128xbf16, #tpu.memory_space<vmem>>, vector<128x128xbf16>
    %cst_15 = arith.constant dense<0.000000e+00> : vector<8x128xf32>
    %30 = tpu.matmul %28, %29, %cst_15 {dimension_numbers = #tpu.dot_dimension_numbers<[1], [0], [0], [1], [0, 0, 1, 1], [], []>} : vector<8x128xbf16>, vector<128x128xbf16>, vector<8x128xf32> -> vector<8x128xf32>
    %c0_16 = arith.constant 0 : index
    %c0_17 = arith.constant 0 : index
    %31 = vector.load %arg9[%c0_16, %c0_17] : memref<1x128xf32, #tpu.memory_space<vmem>>, vector<1x128xf32>
    %32 = vector.broadcast %31 : vector<1x128xf32> to vector<8x128xf32>
    %33 = arith.addf %30, %32 : vector<8x128xf32>
    %c0_18 = arith.constant 0 : index
    %c0_19 = arith.constant 0 : index
    %34 = vector.load %arg10[%c0_18, %c0_19] : memref<8x128xf32, #tpu.memory_space<vmem>>, vector<8x128xf32>
    tpu.vector_store %arg10[%c0_18, %c0_19], %33 {strides = array<i32>} : memref<8x128xf32, #tpu.memory_space<vmem>>, vector<8x128xf32>,
    return
  }
  func.func @transform_0(%arg0: i32) -> i32 {
    %c0_i32 = arith.constant 0 : i32
    %c0_i32_0 = arith.constant 0 : i32
    return %c0_i32 : i32
  }
  func.func @transform_1(%arg0: i32) -> i32 {
    %c0_i32 = arith.constant 0 : i32
    %c0_i32_0 = arith.constant 0 : i32
    return %c0_i32 : i32
  }
  func.func @transform_2(%arg0: i32) -> (i32, i32) {
    %c0_i32 = arith.constant 0 : i32
    %c0_i32_0 = arith.constant 0 : i32
    return %arg0, %c0_i32 : i32, i32
  }
  func.func @transform_3(%arg0: i32) -> (i32, i32) {
    %c0_i32 = arith.constant 0 : i32
    %c0_i32_0 = arith.constant 0 : i32
    %c0_i32_1 = arith.constant 0 : i32
    return %c0_i32, %c0_i32_0 : i32, i32
  }
  func.func @transform_4(%arg0: i32) -> (i32, i32) {
    %c0_i32 = arith.constant 0 : i32
    %c0_i32_0 = arith.constant 0 : i32
    %c0_i32_1 = arith.constant 0 : i32
    return %c0_i32, %c0_i32_0 : i32, i32
  }
  func.func @transform_5(%arg0: i32) -> (i32, i32) {
    %c0_i32 = arith.constant 0 : i32
    %c0_i32_0 = arith.constant 0 : i32
    %c0_i32_1 = arith.constant 0 : i32
    return %c0_i32, %c0_i32_0 : i32, i32
  }
  func.func @transform_6(%arg0: i32) -> (i32, i32) {
    %c0_i32 = arith.constant 0 : i32
    %c0_i32_0 = arith.constant 0 : i32
    %c0_i32_1 = arith.constant 0 : i32
    return %c0_i32, %c0_i32_0 : i32, i32
  }
  func.func @transform_7(%arg0: i32) -> (i32, i32) {
    %c0_i32 = arith.constant 0 : i32
    %c0_i32_0 = arith.constant 0 : i32
    %c0_i32_1 = arith.constant 0 : i32
    return %c0_i32, %c0_i32_0 : i32, i32
  }
  func.func @transform_8(%arg0: i32) -> (i32, i32) {
    %c0_i32 = arith.constant 0 : i32
    %c0_i32_0 = arith.constant 0 : i32
    %c0_i32_1 = arith.constant 0 : i32
    return %c0_i32, %c0_i32_0 : i32, i32
  }
  func.func @transform_9(%arg0: i32) -> (i32, i32) {
    %c0_i32 = arith.constant 0 : i32
    %c0_i32_0 = arith.constant 0 : i32
    return %arg0, %c0_i32 : i32, i32
  }
}

</mosaic_0001>

<llo_original>
// kernel: tpu_custom_call.1
$region0: #{tpu_custom_call.1}
  #allocation0 [shape = 'u32[]', space=smem, size = 0x4, offset = 0x4, fixed_abs, tag = 'smem constant byte address 0x4 - core index']
  #allocation1 [shape = 'u32[144,128]{1,0:T(1,128)}', space=vmem, size = 0x12000, scoped, tag = 'internal scratch']
  #allocation2 [shape = 'f32[1]{0:T(128)S(6)}', space=smem, size = 0x200, scoped, tag = 'scoped memory for tpu_custom_call.1']
  #allocation3 [shape = 'f32[1]{0:T(128)S(6)}', space=smem, size = 0x200, scoped, tag = 'scoped memory for tpu_custom_call.1']
  %s0 = inlined_call_operand.<no memory space> [shape: f32[1], index: 0, kind: input, shape index: {}]
  %s1 = inlined_call_operand.<no memory space> [shape: f32[1], index: 1, kind: input, shape index: {}]
  %s2 = inlined_call_operand.vmem [shape: bf16[8,128], index: 2, kind: input, shape index: {}]
  %s3 = inlined_call_operand.hbm [shape: bf16[128,128], index: 3, kind: input, shape index: {}]
  %s4 = inlined_call_operand.vmem [shape: f32[1,128], index: 4, kind: input, shape index: {}]
  %s5 = inlined_call_operand.hbm [shape: bf16[128,128], index: 5, kind: input, shape index: {}]
  %s6 = inlined_call_operand.vmem [shape: f32[1,128], index: 6, kind: input, shape index: {}]
  %s7 = inlined_call_operand.hbm [shape: bf16[128,128], index: 7, kind: input, shape index: {}]
  %s8 = inlined_call_operand.vmem [shape: f32[1,128], index: 8, kind: input, shape index: {}]
  %s9 = inlined_call_operand.hbm [shape: f32[8,128], index: 9, kind: output, shape index: {}]
  %s10 = sld [smem:[#allocation0]]
  $region58: #{tpu_custom_call.1} parent=0
    _
  %s12 = ssub.s32 1, %s10
  %s13 = scalar_select 0, %s12, %s10
  %14 = sst [smem:[#allocation2]] %s0
  %15 = sst [smem:[#allocation3]] %s1
  $region1: #{tpu_custom_call.1} parent=0
    #allocation4 [shape = 'u8[32768]{0}', space=vmem, size = 0x8000, scoped, tag = 'input window, operand 3, single buffered']
    #allocation5 [shape = 's32[1]{0}', space=sflag, size = 0x4, scoped, tag = 'scoped memory for tpu_custom_call.1']
    #allocation6 [shape = 's32[1]{0}', space=sflag, size = 0x4, scoped, tag = 'scoped memory for tpu_custom_call.1']
    #allocation7 [shape = 'u8[32768]{0}', space=vmem, size = 0x8000, scoped, tag = 'input window, operand 5, single buffered']
    #allocation8 [shape = 's32[1]{0}', space=sflag, size = 0x4, scoped, tag = 'scoped memory for tpu_custom_call.1']
    #allocation9 [shape = 'u8[32768]{0}', space=vmem, size = 0x8000, scoped, tag = 'input window, operand 7, single buffered']
    #allocation10 [shape = 'u8[4096]{0}', space=vmem, size = 0x1000, scoped, tag = 'output window, operand 0, single buffered']
    %16 = vsyncpa [#allocation5], 0
    %17 = vsyncpa [#allocation8], 0
    %18 = vsyncpa [#allocation6], 0
    // Predicated region
    $region2: #{tpu_custom_call.1} parent=1 // pred_check
      _
    $region3: #{tpu_custom_call.1} parent=1 // pred_check_branch
      %20 = sbr.rel (0) target = $region5
    $region4: #{tpu_custom_call.1} parent=1 // pred_region
      _
    $region5: #{tpu_custom_call.1} parent=1 // pred_fallthru
      _
    // Predicated region
    $region6: #{tpu_custom_call.1} parent=1 // pred_check
      _
    $region7: #{tpu_custom_call.1} parent=1 // pred_check_branch
      %22 = sbr.rel (0) target = $region9
    $region8: #{tpu_custom_call.1} parent=1 // pred_region
      _
    $region9: #{tpu_custom_call.1} parent=1 // pred_fallthru
      _
    // Predicated region
    $region10: #{tpu_custom_call.1} parent=1 // pred_check
      _
    $region11: #{tpu_custom_call.1} parent=1 // pred_check_branch
      %24 = sbr.rel (0) target = $region13
    $region12: #{tpu_custom_call.1} parent=1 // pred_region
      _
    $region13: #{tpu_custom_call.1} parent=1 // pred_fallthru
      _
    // Predicated region
    $region14: #{tpu_custom_call.1} parent=1 // pred_check
      _
    $region15: #{tpu_custom_call.1} parent=1 // pred_check_branch
      %26 = sbr.rel (0) target = $region17
    $region16: #{tpu_custom_call.1} parent=1 // pred_region
      %s28 = ssub.s32 1024, 1024
      %29 = vsyncadd [#allocation5], %s28
      %s30 = sshll.u32 [#allocation4], 4
      %s31 = int_to_ptr.vmem [resolvable:$true] %s30
      %36 = dma.hbm_to_vmem [thread:$0]  %s3, 1024, %s31, [#allocation5], 64, 64, 4
    $region17: #{tpu_custom_call.1} parent=1 // pred_fallthru
      _
    // Predicated region
    $region18: #{tpu_custom_call.1} parent=1 // pred_check
      _
    $region19: #{tpu_custom_call.1} parent=1 // pred_check_branch
      %38 = sbr.rel (0) target = $region21
    $region20: #{tpu_custom_call.1} parent=1 // pred_region
      _
    $region21: #{tpu_custom_call.1} parent=1 // pred_fallthru
      _
    // Predicated region
    $region22: #{tpu_custom_call.1} parent=1 // pred_check
      _
    $region23: #{tpu_custom_call.1} parent=1 // pred_check_branch
      %40 = sbr.rel (0) target = $region25
    $region24: #{tpu_custom_call.1} parent=1 // pred_region
      %s42 = ssub.s32 1024, 1024
      %43 = vsyncadd [#allocation8], %s42
      %s44 = sshll.u32 [#allocation7], 4
      %s45 = int_to_ptr.vmem [resolvable:$true] %s44
      %50 = dma.hbm_to_vmem [thread:$0]  %s5, 1024, %s45, [#allocation8], 64, 64, 4
    $region25: #{tpu_custom_call.1} parent=1 // pred_fallthru
      _
    // Predicated region
    $region26: #{tpu_custom_call.1} parent=1 // pred_check
      _
    $region27: #{tpu_custom_call.1} parent=1 // pred_check_branch
      %52 = sbr.rel (0) target = $region29
    $region28: #{tpu_custom_call.1} parent=1 // pred_region
      _
    $region29: #{tpu_custom_call.1} parent=1 // pred_fallthru
      _
    // Predicated region
    $region30: #{tpu_custom_call.1} parent=1 // pred_check
      _
    $region31: #{tpu_custom_call.1} parent=1 // pred_check_branch
      %54 = sbr.rel (0) target = $region33
    $region32: #{tpu_custom_call.1} parent=1 // pred_region
      %s56 = ssub.s32 1024, 1024
      %57 = vsyncadd [#allocation8], %s56
      %s58 = sshll.u32 [#allocation9], 4
      %s59 = int_to_ptr.vmem [resolvable:$true] %s58
      %64 = dma.hbm_to_vmem [thread:$0]  %s7, 1024, %s59, [#allocation8], 64, 64, 4
    $region33: #{tpu_custom_call.1} parent=1 // pred_fallthru
      _
    // Predicated region
    $region34: #{tpu_custom_call.1} parent=1 // pred_check
      _
    $region35: #{tpu_custom_call.1} parent=1 // pred_check_branch
      %66 = sbr.rel (0) target = $region37
    $region36: #{tpu_custom_call.1} parent=1 // pred_region
      _
    $region37: #{tpu_custom_call.1} parent=1 // pred_fallthru
      _
    // Predicated region
    $region38: #{tpu_custom_call.1} parent=1 // pred_check
      _
    $region39: #{tpu_custom_call.1} parent=1 // pred_check_branch
      %68 = sbr.rel (0) target = $region41
    $region40: #{tpu_custom_call.1} parent=1 // pred_region
      %69 = dma.done [#allocation5], 1024
    $region41: #{tpu_custom_call.1} parent=1 // pred_fallthru
      _
    // Predicated region
    $region42: #{tpu_custom_call.1} parent=1 // pred_check
      _
    $region43: #{tpu_custom_call.1} parent=1 // pred_check_branch
      %71 = sbr.rel (0) target = $region45
    $region44: #{tpu_custom_call.1} parent=1 // pred_region
      %72 = dma.done [#allocation8], 1024
    $region45: #{tpu_custom_call.1} parent=1 // pred_fallthru
      _
    // Predicated region
    $region46: #{tpu_custom_call.1} parent=1 // pred_check
      _
    $region47: #{tpu_custom_call.1} parent=1 // pred_check_branch
      %74 = sbr.rel (0) target = $region49
    $region48: #{tpu_custom_call.1} parent=1 // pred_region
      %75 = dma.done [#allocation8], 1024
    $region49: #{tpu_custom_call.1} parent=1 // pred_fallthru
      _
    %s77 = sld [smem:[#allocation2]]
    %s78 = sld [smem:[#allocation3]]
    %v79 = vld [vmem:[%s2] sm:$0xf]
    %v80 = vld [vmem:[#allocation4] sm:$0xf]
    %v81 = vld [vmem:[#allocation4 + $0x4] sm:$0xf]
    %v82 = vld [vmem:[#allocation4 + $0x8] sm:$0xf]
    %v83 = vld [vmem:[#allocation4 + $0xc] sm:$0xf]
    %v84 = vld [vmem:[#allocation4 + $0x10] sm:$0xf]
    %v85 = vld [vmem:[#allocation4 + $0x14] sm:$0xf]
    %v86 = vld [vmem:[#allocation4 + $0x18] sm:$0xf]
    %v87 = vld [vmem:[#allocation4 + $0x1c] sm:$0xf]
    %v88 = vld [vmem:[#allocation4 + $0x20] sm:$0xf]
    %v89 = vld [vmem:[#allocation4 + $0x24] sm:$0xf]
    %v90 = vld [vmem:[#allocation4 + $0x28] sm:$0xf]
    %v91 = vld [vmem:[#allocation4 + $0x2c] sm:$0xf]
    %v92 = vld [vmem:[#allocation4 + $0x30] sm:$0xf]
    %v93 = vld [vmem:[#allocation4 + $0x34] sm:$0xf]
    %v94 = vld [vmem:[#allocation4 + $0x38] sm:$0xf]
    %v95 = vld [vmem:[#allocation4 + $0x3c] sm:$0xf]
    %v96 = vld [vmem:[%s4] sm:$0x1]
    %v98 = vlaneseq
    %v99 = vshrl.u32 %v98, 7
    %v100 = vsub.s32 0, %v99
    %v101 = vrot.slane %v96, %v100
    %v119 = vunpack.c.l.b16 %v80
    %v120 = vunpack.c.l.b16 %v81
    %v121 = vunpack.c.l.b16 %v82
    %v122 = vunpack.c.l.b16 %v83
    %v123 = vunpack.c.l.b16 %v84
    %v124 = vunpack.c.l.b16 %v85
    %v125 = vunpack.c.l.b16 %v86
    %v126 = vunpack.c.l.b16 %v87
    %v127 = vunpack.c.l.b16 %v88
    %v128 = vunpack.c.l.b16 %v89
    %v129 = vunpack.c.l.b16 %v90
    %v130 = vunpack.c.l.b16 %v91
    %v131 = vunpack.c.l.b16 %v92
    %v132 = vunpack.c.l.b16 %v93
    %v133 = vunpack.c.l.b16 %v94
    %v134 = vunpack.c.l.b16 %v95
    %v135 = vpack.c.b16 %v120, %v119
    %v136 = vpack.c.b16 %v122, %v121
    %v137 = vpack.c.b16 %v124, %v123
    %v138 = vpack.c.b16 %v126, %v125
    %v139 = vpack.c.b16 %v128, %v127
    %v140 = vpack.c.b16 %v130, %v129
    %v141 = vpack.c.b16 %v132, %v131
    %v142 = vpack.c.b16 %v134, %v133
    %151 = vmatprep.subr.bf16.mxu0 0
    %152 = vmatpush1.bf16.msra.mxu0 %v135
    %153 = vmatprep.subr.bf16.mxu0 0
    %154 = vmatpush1.bf16.msra.mxu0 %v136
    %155 = vmatprep.subr.bf16.mxu0 0
    %156 = vmatpush1.bf16.msra.mxu0 %v137
    %157 = vmatprep.subr.bf16.mxu0 0
    %158 = vmatpush1.bf16.msra.mxu0 %v138
    %159 = vmatprep.subr.bf16.mxu0 0
    %160 = vmatpush1.bf16.msra.mxu0 %v139
    %161 = vmatprep.subr.bf16.mxu0 0
    %162 = vmatpush1.bf16.msra.mxu0 %v140
    %163 = vmatprep.subr.bf16.mxu0 0
    %164 = vmatpush1.bf16.msra.mxu0 %v141
    %165 = vmatprep.subr.bf16.mxu0 0
    %166 = vmatpush1.bf16.msra.mxu0 %v142
    %167 = vmatprep.subr.bf16.mxu0 0
    %168 = vmatpush1.bf16.msra.mxu0 0
    %169 = vmatprep.subr.bf16.mxu0 0
    %170 = vmatpush1.bf16.msra.mxu0 0
    %171 = vmatprep.subr.bf16.mxu0 0
    %172 = vmatpush1.bf16.msra.mxu0 0
    %173 = vmatprep.subr.bf16.mxu0 0
    %174 = vmatpush1.bf16.msra.mxu0 0
    %175 = vmatprep.subr.bf16.mxu0 0
    %176 = vmatpush1.bf16.msra.mxu0 0
    %177 = vmatprep.subr.bf16.mxu0 0
    %178 = vmatpush1.bf16.msra.mxu0 0
    %179 = vmatprep.subr.bf16.mxu0 0
    %180 = vmatpush1.bf16.msra.mxu0 0
    %181 = vmatprep.subr.bf16.mxu0 0
    %182 = vmatpush1.bf16.msra.mxu0 0
    %183 = vmatprep.mubr.bf16.mxu0 0
    %184 = vmatmul.mubr.bf16.gmra.mrb[0].mxu0 %v79
    %v185 = vpop.f32.mrb[0].mxu0
    %v186 = vadd.f32 %v101, %v185
    %v187 = vpop.f32.mrb[0].mxu0
    %v188 = vpop.f32.mrb[0].mxu0
    %v189 = vpop.f32.mrb[0].mxu0
    %190 = vdwg.mxu0
    %v191 = vmul.f32 %v186, %v186
    %v192 = vand.u32 2147483647, %v186
    %vm193 = vcmp.le.f32.partialorder %v192, 0.7853982
    %vm194 = vcmp.lt.s32.totalorder %v186, 0
    %v195 = vand.u32 %v186, 2139095040
    %v196 = vshrl.u32 %v195, 23
    %v197 = vsub.s32 %v196, 127
    %v198 = vand.u32 2147483647, %v186
    %v199 = vand.u32 %v198, 8388607
    %v200 = vor.u32 %v199, 8388608
    %v201 = vsub.s32 0, %v200
    %v202 = vadd.s32 %v197, 1
    %vm203 = vcmp.gt.s32.totalorder %v202, 0
    %v204 = vsel %vm203, %v202, 0
    %v205 = vshrl.u32 %v204, 5
    %v206 = vand.u32 %v204, 31
    %v207 = vsub.s32 32, %v206
    %v208 = vshrl.u32 683565275, %v207
    %v209 = vshll.u32 683565275, %v206
    %v210 = vshrl.u32 2475754826, %v207
    %v211 = vor.u32 %v209, %v210
    %v212 = vshll.u32 2475754826, %v206
    %v213 = vshrl.u32 2131351028, %v207
    %v214 = vor.u32 %v212, %v213
    %v215 = vshll.u32 2131351028, %v206
    %v216 = vshrl.u32 2102212464, %v207
    %v217 = vor.u32 %v215, %v216
    %v218 = vshll.u32 2102212464, %v206
    %v219 = vshrl.u32 920167782, %v207
    %v220 = vor.u32 %v218, %v219
    %v221 = vshll.u32 920167782, %v206
    %v222 = vshrl.u32 1326507024, %v207
    %v223 = vor.u32 %v221, %v222
    %vm224 = vcmp.lt.s32.totalorder %v205, 1
    %vm225 = vcmp.lt.s32.totalorder %v205, 2
    %vm226 = vcmp.lt.s32.totalorder %v205, 3
    %vm227 = vcmp.lt.s32.totalorder %v205, 4
    %v228 = vsel %vm224, %v208, %v211
    %v229 = vsel %vm227, %v217, 2102212464
    %v230 = vsel %vm226, %v214, %v229
    %v231 = vsel %vm225, %v228, %v230
    %v232 = vsel %vm224, %v211, %v214
    %v233 = vsel %vm227, %v220, 920167782
    %v234 = vsel %vm226, %v217, %v233
    %v235 = vsel %vm225, %v232, %v234
    %v236 = vsel %vm224, %v214, %v217
    %v237 = vsel %vm227, %v223, 1326507024
    %v238 = vsel %vm226, %v220, %v237
    %v239 = vsel %vm225, %v236, %v238
    %v240 = vshll.u32 %v200, 8
    %v241 = vmul.u32.u64.compose %v240, %v239
    %v242 = vextract.low.u32 %v241
    %v243 = vextract.high.u32 %v241
    %v244 = vmul.u32.u64.compose %v240, %v235
    %v245 = vextract.low.u32 %v244
    %v246 = vextract.high.u32 %v244
    %v247 = vmul.u32 %v240, %v231
    %v248 = vadd.s32 %v243, %v245
    %vm249 = vc.u32 %v243, %v245
    %v250 = vadd.s32 %v246, 1
    %v251 = vsel %vm249, %v250, %v246
    %v252 = vadd.s32 %v247, %v251
    %v253 = vadd.s32 %v252, 536870912
    %v254 = vshrl.u32 %v253, 30
    %v255 = vshll.u32 %v254, 30
    %v256 = vsub.s32 %v252, %v255
    %vm257 = vcmp.lt.s32.totalorder %v256, 0
    %v258 = vsub.s32 0, %v256
    %v259 = vsel %vm257, %v258, %v256
    %v260 = vclz %v259
    %v261 = vsub.s32 %v260, 2
    %vm262 = vcmp.gt.s32.totalorder 0, %v261
    %v263 = vsel %vm262, 0, %v261
    %v264 = vsub.s32 32, %v263
    %v265 = vshll.u32 %v256, %v263
    %v266 = vshrl.u32 %v248, %v264
    %v267 = vor.u32 %v265, %v266
    %v268 = vsub.s32 4294967266, %v263
    %v269 = vadd.s32 %v268, 127
    %v270 = vshll.u32 %v269, 23
    %v271 = vor.u32 4788187, %v270
    %v272 = vand.u32 2147483647, %v271
    %v274 = vcvt.s32.f32 %v267
    %v275 = vmul.f32 %v274, %v272
    %v276 = vxor.u32 %v275, 2147483648
    %v277 = vsel %vm194, %v276, %v275
    %v278 = vsub.s32 4, %v254
    %v279 = vsel %vm194, %v278, %v254
    %v280 = vsel %vm193, %v186, %v277
    %v281 = vsel %vm193, 0, %v279
    %v282 = vcosq.f32.pop %v280
    %v283 = vsinq.f32.pop %v280
    %vm284 = vweird.f32 %v186
    %v285 = vadd.s32 %v281, 3
    %v286 = vand.u32 %v285, 3
    %vm287 = vcmp.lt.s32.totalorder %v286, 2
    %vm288 = vcmp.eq.s32.totalorder %v286, 0
    %v289 = vxor.u32 %v283, 2147483648
    %v290 = vsel %vm288, %v282, %v289
    %vm291 = vcmp.eq.s32.totalorder %v286, 2
    %v292 = vxor.u32 %v282, 2147483648
    %v293 = vsel %vm291, %v292, %v283
    %v294 = vsel %vm287, %v290, %v293
    %v295 = vsel %vm284, nan, %v294
    %v296 = vand.u32 2147483647, %v186
    %vm297 = vcmp.le.f32.partialorder %v296, 0.7853982
    %vm298 = vcmp.lt.s32.totalorder %v186, 0
    %v299 = vand.u32 %v186, 2139095040
    %v300 = vshrl.u32 %v299, 23
    %v301 = vsub.s32 %v300, 127
    %v302 = vand.u32 2147483647, %v186
    %v303 = vand.u32 %v302, 8388607
    %v304 = vor.u32 %v303, 8388608
    %v305 = vsub.s32 0, %v304
    %v306 = vadd.s32 %v301, 1
    %vm307 = vcmp.gt.s32.totalorder %v306, 0
    %v308 = vsel %vm307, %v306, 0
    %v309 = vshrl.u32 %v308, 5
    %v310 = vand.u32 %v308, 31
    %v311 = vsub.s32 32, %v310
    %v312 = vshrl.u32 683565275, %v311
    %v313 = vshll.u32 683565275, %v310
    %v314 = vshrl.u32 2475754826, %v311
    %v315 = vor.u32 %v313, %v314
    %v316 = vshll.u32 2475754826, %v310
    %v317 = vshrl.u32 2131351028, %v311
    %v318 = vor.u32 %v316, %v317
    %v319 = vshll.u32 2131351028, %v310
    %v320 = vshrl.u32 2102212464, %v311
    %v321 = vor.u32 %v319, %v320
    %v322 = vshll.u32 2102212464, %v310
    %v323 = vshrl.u32 920167782, %v311
    %v324 = vor.u32 %v322, %v323
    %v325 = vshll.u32 920167782, %v310
    %v326 = vshrl.u32 1326507024, %v311
    %v327 = vor.u32 %v325, %v326
    %vm328 = vcmp.lt.s32.totalorder %v309, 1
    %vm329 = vcmp.lt.s32.totalorder %v309, 2
    %vm330 = vcmp.lt.s32.totalorder %v309, 3
    %vm331 = vcmp.lt.s32.totalorder %v309, 4
    %v332 = vsel %vm328, %v312, %v315
    %v333 = vsel %vm331, %v321, 2102212464
    %v334 = vsel %vm330, %v318, %v333
    %v335 = vsel %vm329, %v332, %v334
    %v336 = vsel %vm328, %v315, %v318
    %v337 = vsel %vm331, %v324, 920167782
    %v338 = vsel %vm330, %v321, %v337
    %v339 = vsel %vm329, %v336, %v338
    %v340 = vsel %vm328, %v318, %v321
    %v341 = vsel %vm331, %v327, 1326507024
    %v342 = vsel %vm330, %v324, %v341
    %v343 = vsel %vm329, %v340, %v342
    %v344 = vshll.u32 %v304, 8
    %v345 = vmul.u32.u64.compose %v344, %v343
    %v346 = vextract.low.u32 %v345
    %v347 = vextract.high.u32 %v345
    %v348 = vmul.u32.u64.compose %v344, %v339
    %v349 = vextract.low.u32 %v348
    %v350 = vextract.high.u32 %v348
    %v351 = vmul.u32 %v344, %v335
    %v352 = vadd.s32 %v347, %v349
    %vm353 = vc.u32 %v347, %v349
    %v354 = vadd.s32 %v350, 1
    %v355 = vsel %vm353, %v354, %v350
    %v356 = vadd.s32 %v351, %v355
    %v357 = vadd.s32 %v356, 536870912
    %v358 = vshrl.u32 %v357, 30
    %v359 = vshll.u32 %v358, 30
    %v360 = vsub.s32 %v356, %v359
    %vm361 = vcmp.lt.s32.totalorder %v360, 0
    %v362 = vsub.s32 0, %v360
    %v363 = vsel %vm361, %v362, %v360
    %v364 = vclz %v363
    %v365 = vsub.s32 %v364, 2
    %vm366 = vcmp.gt.s32.totalorder 0, %v365
    %v367 = vsel %vm366, 0, %v365
    %v368 = vsub.s32 32, %v367
    %v369 = vshll.u32 %v360, %v367
    %v370 = vshrl.u32 %v352, %v368
    %v371 = vor.u32 %v369, %v370
    %v372 = vsub.s32 4294967266, %v367
    %v373 = vadd.s32 %v372, 127
    %v374 = vshll.u32 %v373, 23
    %v375 = vor.u32 4788187, %v374
    %v376 = vand.u32 2147483647, %v375
    %v378 = vcvt.s32.f32 %v371
    %v379 = vmul.f32 %v378, %v376
    %v380 = vxor.u32 %v379, 2147483648
    %v381 = vsel %vm298, %v380, %v379
    %v382 = vsub.s32 4, %v358
    %v383 = vsel %vm298, %v382, %v358
    %v384 = vsel %vm297, %v186, %v381
    %v385 = vsel %vm297, 0, %v383
    %v386 = vcosq.f32.pop %v384
    %v387 = vsinq.f32.pop %v384
    %vm388 = vweird.f32 %v186
    %v389 = vand.u32 %v385, 3
    %vm390 = vcmp.lt.s32.totalorder %v389, 2
    %vm391 = vcmp.eq.s32.totalorder %v389, 0
    %v392 = vxor.u32 %v387, 2147483648
    %v393 = vsel %vm391, %v386, %v392
    %vm394 = vcmp.eq.s32.totalorder %v389, 2
    %v395 = vxor.u32 %v386, 2147483648
    %v396 = vsel %vm394, %v395, %v387
    %v397 = vsel %vm390, %v393, %v396
    %v398 = vsel %vm388, nan, %v397
    %v399 = vmax.f32 %v186, 0.0
    %v400 = vstv %s77
    %v401 = vmul.f32 %v400, %v186
    %v402 = vmul.f32 %v401, %v295
    %v403 = vadd.f32 %v399, %v402
    %v404 = vstv %s78
    %v405 = vmul.f32 %v404, %v191
    %v406 = vmul.f32 %v405, %v398
    %v407 = vadd.f32 %v403, %v406
    %v408 = vpack.c.bf16 %v407, %v407
    %v409 = vld [vmem:[#allocation7] sm:$0xf]
    %v410 = vld [vmem:[#allocation7 + $0x4] sm:$0xf]
    %v411 = vld [vmem:[#allocation7 + $0x8] sm:$0xf]
    %v412 = vld [vmem:[#allocation7 + $0xc] sm:$0xf]
    %v413 = vld [vmem:[#allocation7 + $0x10] sm:$0xf]
    %v414 = vld [vmem:[#allocation7 + $0x14] sm:$0xf]
    %v415 = vld [vmem:[#allocation7 + $0x18] sm:$0xf]
    %v416 = vld [vmem:[#allocation7 + $0x1c] sm:$0xf]
    %v417 = vld [vmem:[#allocation7 + $0x20] sm:$0xf]
    %v418 = vld [vmem:[#allocation7 + $0x24] sm:$0xf]
    %v419 = vld [vmem:[#allocation7 + $0x28] sm:$0xf]
    %v420 = vld [vmem:[#allocation7 + $0x2c] sm:$0xf]
    %v421 = vld [vmem:[#allocation7 + $0x30] sm:$0xf]
    %v422 = vld [vmem:[#allocation7 + $0x34] sm:$0xf]
    %v423 = vld [vmem:[#allocation7 + $0x38] sm:$0xf]
    %v424 = vld [vmem:[#allocation7 + $0x3c] sm:$0xf]
    %v425 = vld [vmem:[%s6] sm:$0x1]
    %v427 = vlaneseq
    %v428 = vshrl.u32 %v427, 7
    %v429 = vsub.s32 0, %v428
    %v430 = vrot.slane %v425, %v429
    %v448 = vunpack.c.l.b16 %v409
    %v449 = vunpack.c.l.b16 %v410
    %v450 = vunpack.c.l.b16 %v411
    %v451 = vunpack.c.l.b16 %v412
    %v452 = vunpack.c.l.b16 %v413
    %v453 = vunpack.c.l.b16 %v414
    %v454 = vunpack.c.l.b16 %v415
    %v455 = vunpack.c.l.b16 %v416
    %v456 = vunpack.c.l.b16 %v417
    %v457 = vunpack.c.l.b16 %v418
    %v458 = vunpack.c.l.b16 %v419
    %v459 = vunpack.c.l.b16 %v420
    %v460 = vunpack.c.l.b16 %v421
    %v461 = vunpack.c.l.b16 %v422
    %v462 = vunpack.c.l.b16 %v423
    %v463 = vunpack.c.l.b16 %v424
    %v464 = vpack.c.b16 %v449, %v448
    %v465 = vpack.c.b16 %v451, %v450
    %v466 = vpack.c.b16 %v453, %v452
    %v467 = vpack.c.b16 %v455, %v454
    %v468 = vpack.c.b16 %v457, %v456
    %v469 = vpack.c.b16 %v459, %v458
    %v470 = vpack.c.b16 %v461, %v460
    %v471 = vpack.c.b16 %v463, %v462
    %480 = vmatprep.subr.bf16.mxu0 0
    %481 = vmatpush1.bf16.msra.mxu0 %v464
    %482 = vmatprep.subr.bf16.mxu0 0
    %483 = vmatpush1.bf16.msra.mxu0 %v465
    %484 = vmatprep.subr.bf16.mxu0 0
    %485 = vmatpush1.bf16.msra.mxu0 %v466
    %486 = vmatprep.subr.bf16.mxu0 0
    %487 = vmatpush1.bf16.msra.mxu0 %v467
    %488 = vmatprep.subr.bf16.mxu0 0
    %489 = vmatpush1.bf16.msra.mxu0 %v468
    %490 = vmatprep.subr.bf16.mxu0 0
    %491 = vmatpush1.bf16.msra.mxu0 %v469
    %492 = vmatprep.subr.bf16.mxu0 0
    %493 = vmatpush1.bf16.msra.mxu0 %v470
    %494 = vmatprep.subr.bf16.mxu0 0
    %495 = vmatpush1.bf16.msra.mxu0 %v471
    %496 = vmatprep.subr.bf16.mxu0 0
    %497 = vmatpush1.bf16.msra.mxu0 0
    %498 = vmatprep.subr.bf16.mxu0 0
    %499 = vmatpush1.bf16.msra.mxu0 0
    %500 = vmatprep.subr.bf16.mxu0 0
    %501 = vmatpush1.bf16.msra.mxu0 0
    %502 = vmatprep.subr.bf16.mxu0 0
    %503 = vmatpush1.bf16.msra.mxu0 0
    %504 = vmatprep.subr.bf16.mxu0 0
    %505 = vmatpush1.bf16.msra.mxu0 0
    %506 = vmatprep.subr.bf16.mxu0 0
    %507 = vmatpush1.bf16.msra.mxu0 0
    %508 = vmatprep.subr.bf16.mxu0 0
    %509 = vmatpush1.bf16.msra.mxu0 0
    %510 = vmatprep.subr.bf16.mxu0 0
    %511 = vmatpush1.bf16.msra.mxu0 0
    %512 = vmatprep.mubr.bf16.mxu0 0
    %513 = vmatmul.mubr.bf16.gmra.mrb[0].mxu0 %v408
    %v514 = vpop.f32.mrb[0].mxu0
    %v515 = vadd.f32 %v430, %v514
    %v516 = vpop.f32.mrb[0].mxu0
    %v517 = vpop.f32.mrb[0].mxu0
    %v518 = vpop.f32.mrb[0].mxu0
    %519 = vdwg.mxu0
    %v520 = vtanh.pop %v515
    %v521 = vpack.c.bf16 %v520, %v520
    %v522 = vld [vmem:[#allocation9] sm:$0xf]
    %v523 = vld [vmem:[#allocation9 + $0x4] sm:$0xf]
    %v524 = vld [vmem:[#allocation9 + $0x8] sm:$0xf]
    %v525 = vld [vmem:[#allocation9 + $0xc] sm:$0xf]
    %v526 = vld [vmem:[#allocation9 + $0x10] sm:$0xf]
    %v527 = vld [vmem:[#allocation9 + $0x14] sm:$0xf]
    %v528 = vld [vmem:[#allocation9 + $0x18] sm:$0xf]
    %v529 = vld [vmem:[#allocation9 + $0x1c] sm:$0xf]
    %v530 = vld [vmem:[#allocation9 + $0x20] sm:$0xf]
    %v531 = vld [vmem:[#allocation9 + $0x24] sm:$0xf]
    %v532 = vld [vmem:[#allocation9 + $0x28] sm:$0xf]
    %v533 = vld [vmem:[#allocation9 + $0x2c] sm:$0xf]
    %v534 = vld [vmem:[#allocation9 + $0x30] sm:$0xf]
    %v535 = vld [vmem:[#allocation9 + $0x34] sm:$0xf]
    %v536 = vld [vmem:[#allocation9 + $0x38] sm:$0xf]
    %v537 = vld [vmem:[#allocation9 + $0x3c] sm:$0xf]
    %v538 = vld [vmem:[%s8] sm:$0x1]
    %v540 = vlaneseq
    %v541 = vshrl.u32 %v540, 7
    %v542 = vsub.s32 0, %v541
    %v543 = vrot.slane %v538, %v542
    %v561 = vunpack.c.l.b16 %v522
    %v562 = vunpack.c.l.b16 %v523
    %v563 = vunpack.c.l.b16 %v524
    %v564 = vunpack.c.l.b16 %v525
    %v565 = vunpack.c.l.b16 %v526
    %v566 = vunpack.c.l.b16 %v527
    %v567 = vunpack.c.l.b16 %v528
    %v568 = vunpack.c.l.b16 %v529
    %v569 = vunpack.c.l.b16 %v530
    %v570 = vunpack.c.l.b16 %v531
    %v571 = vunpack.c.l.b16 %v532
    %v572 = vunpack.c.l.b16 %v533
    %v573 = vunpack.c.l.b16 %v534
    %v574 = vunpack.c.l.b16 %v535
    %v575 = vunpack.c.l.b16 %v536
    %v576 = vunpack.c.l.b16 %v537
    %v577 = vpack.c.b16 %v562, %v561
    %v578 = vpack.c.b16 %v564, %v563
    %v579 = vpack.c.b16 %v566, %v565
    %v580 = vpack.c.b16 %v568, %v567
    %v581 = vpack.c.b16 %v570, %v569
    %v582 = vpack.c.b16 %v572, %v571
    %v583 = vpack.c.b16 %v574, %v573
    %v584 = vpack.c.b16 %v576, %v575
    %593 = vmatprep.subr.bf16.mxu0 0
    %594 = vmatpush1.bf16.msra.mxu0 %v577
    %595 = vmatprep.subr.bf16.mxu0 0
    %596 = vmatpush1.bf16.msra.mxu0 %v578
    %597 = vmatprep.subr.bf16.mxu0 0
    %598 = vmatpush1.bf16.msra.mxu0 %v579
    %599 = vmatprep.subr.bf16.mxu0 0
    %600 = vmatpush1.bf16.msra.mxu0 %v580
    %601 = vmatprep.subr.bf16.mxu0 0
    %602 = vmatpush1.bf16.msra.mxu0 %v581
    %603 = vmatprep.subr.bf16.mxu0 0
    %604 = vmatpush1.bf16.msra.mxu0 %v582
    %605 = vmatprep.subr.bf16.mxu0 0
    %606 = vmatpush1.bf16.msra.mxu0 %v583
    %607 = vmatprep.subr.bf16.mxu0 0
    %608 = vmatpush1.bf16.msra.mxu0 %v584
    %609 = vmatprep.subr.bf16.mxu0 0
    %610 = vmatpush1.bf16.msra.mxu0 0
    %611 = vmatprep.subr.bf16.mxu0 0
    %612 = vmatpush1.bf16.msra.mxu0 0
    %613 = vmatprep.subr.bf16.mxu0 0
    %614 = vmatpush1.bf16.msra.mxu0 0
    %615 = vmatprep.subr.bf16.mxu0 0
    %616 = vmatpush1.bf16.msra.mxu0 0
    %617 = vmatprep.subr.bf16.mxu0 0
    %618 = vmatpush1.bf16.msra.mxu0 0
    %619 = vmatprep.subr.bf16.mxu0 0
    %620 = vmatpush1.bf16.msra.mxu0 0
    %621 = vmatprep.subr.bf16.mxu0 0
    %622 = vmatpush1.bf16.msra.mxu0 0
    %623 = vmatprep.subr.bf16.mxu0 0
    %624 = vmatpush1.bf16.msra.mxu0 0
    %625 = vmatprep.mubr.bf16.mxu0 0
    %626 = vmatmul.mubr.bf16.gmra.mrb[0].mxu0 %v521
    %v627 = vpop.f32.mrb[0].mxu0
    %v628 = vadd.f32 %v543, %v627
    %v629 = vpop.f32.mrb[0].mxu0
    %v630 = vpop.f32.mrb[0].mxu0
    %v631 = vpop.f32.mrb[0].mxu0
    %632 = vdwg.mxu0
    %633 = vst [vmem:[#allocation10] sm:$0xff] %v628
    // Predicated region
    $region50: #{tpu_custom_call.1} parent=1 // pred_check
      _
    $region51: #{tpu_custom_call.1} parent=1 // pred_check_branch
      %635 = sbr.rel (0) target = $region53
    $region52: #{tpu_custom_call.1} parent=1 // pred_region
      %s637 = ssub.s32 128, 128
      %638 = vsyncadd [#allocation6], %s637
      %s640 = sshll.u32 [#allocation10], 4
      %s641 = int_to_ptr.vmem [resolvable:$true] %s640
      %643 = dma.vmem_to_hbm [thread:$0]  %s641, 128, %s9, [#allocation6]
    $region53: #{tpu_custom_call.1} parent=1 // pred_fallthru
      _
    // Predicated region
    $region54: #{tpu_custom_call.1} parent=1 // pred_check
      _
    $region55: #{tpu_custom_call.1} parent=1 // pred_check_branch
      %645 = sbr.rel (0) target = $region57
    $region56: #{tpu_custom_call.1} parent=1 // pred_region
      %646 = dma.done [#allocation6], 128
    $region57: #{tpu_custom_call.1} parent=1 // pred_fallthru
      _
    %647 = vsyncpa [#allocation5], 1
    %648 = vsyncpa [#allocation8], 1
    %649 = vsyncpa [#allocation6], 1

</llo_original>
